<compile_context>
chip_gen: v5e
topology: v5e:2x2
jax: 0.10.0
libtpu: 0.0.40
codegen_flags: <defaults>
</compile_context>

<pallas_src>
import functools
import math

import jax
import jax.numpy as jnp
from jax.experimental import pallas as pl
from jax.experimental.pallas import tpu as pltpu


# ---------------------------------------------------------------------------
# Numerics helpers (statistics stay f32).
# ---------------------------------------------------------------------------
def _erf(x, use_approx_recip=False):
    # Abramowitz & Stegun 7.1.26 rational approximation (max abs err ~1.5e-7,
    # f32-exact for GELU purposes).  Avoids relying on lax.erf lowering.
    a1, a2, a3, a4, a5 = 0.254829592, -0.284496736, 1.421413741, -1.453152027, 1.061405429
    p = 0.3275911
    s = jnp.sign(x)
    ax = jnp.abs(x)
    denom = 1.0 + p * ax
    if use_approx_recip:
        t = pl.reciprocal(denom, approx=True)     # EUP slot, essentially free
    else:
        t = 1.0 / denom
    poly = ((((a5 * t + a4) * t + a3) * t + a2) * t + a1) * t
    return s * (1.0 - poly * jnp.exp(-ax * ax))


def _gelu_exact(x, use_approx_recip=False):
    # PyTorch nn.GELU() default: exact erf-based GELU.
    return 0.5 * x * (1.0 + _erf(x * 0.7071067811865476, use_approx_recip))


def _layer_norm(x, w, b, eps=1e-5):
    mu = jnp.mean(x, axis=-1, keepdims=True)
    xc = x - mu
    var = jnp.mean(xc * xc, axis=-1, keepdims=True)
    return xc * jax.lax.rsqrt(var + eps) * w + b


# ---------------------------------------------------------------------------
# Kernel 1: fused full-width QKV projection  (tq, E) @ (E, 3E) + bias.
# ---------------------------------------------------------------------------
def _qkv_proj_kernel(compute_dtype, x_ref, w_ref, b_ref, o_ref):
    x = x_ref[0].astype(compute_dtype)                               # (tq, E)
    y = jnp.dot(x, w_ref[...], preferred_element_type=jnp.float32) + b_ref[...]
    o_ref[0] = y.astype(o_ref.dtype)                                 # (tq, 3E)


# ---------------------------------------------------------------------------
# Kernel 2: head-batched attention for one (batch, query-tile).
# ---------------------------------------------------------------------------
def _attention_kernel(compute_dtype, scale, tq, causal, *refs):
    if causal:
        q_ref, k_ref, v_ref, o_ref = refs
        mask = None
    else:
        mask_ref, q_ref, k_ref, v_ref, o_ref = refs
        mask = mask_ref[...]                                         # (tq, S)

    qh = q_ref[0]                                                    # (H, tq, Dh)
    kh = k_ref[0]                                                    # (H, S,  Dh)
    vh = v_ref[0]
    S = kh.shape[1]

    s = jnp.einsum('htd,hsd->hts', qh, kh,
                   preferred_element_type=jnp.float32) * scale       # (H, tq, S)

    if causal:
        # In-kernel additive causal mask: no (tq,S) HBM traffic per grid step.
        q0 = pl.program_id(1) * tq
        row = q0 + jax.lax.broadcasted_iota(jnp.int32, (tq, S), 0)
        col = jax.lax.broadcasted_iota(jnp.int32, (tq, S), 1)
        mask = jnp.where(col <= row, 0.0, -1e9).astype(jnp.float32)
    s = s + mask                                                     # broadcast over H

    m = jnp.max(s, axis=-1, keepdims=True)
    su = s - m
    if jnp.dtype(compute_dtype) == jnp.dtype(jnp.float32):
        p = jnp.exp(su)
        denom = jnp.sum(p, axis=-1, keepdims=True)
        o = jnp.einsum('hts,hsd->htd', p, vh,
                       preferred_element_type=jnp.float32)
        o = o / denom                                  # exact normalize (f32 path)
    else:
        # bf16 exp on the EUP (max & denominator stay f32), approx reciprocal,
        # normalization applied after the PV matmul (H*tq*Dh instead of H*tq*S).
        p = jnp.exp(su.astype(compute_dtype))
        denom = jnp.sum(p.astype(jnp.float32), axis=-1, keepdims=True)
        o = jnp.einsum('hts,hsd->htd', p, vh,
                       preferred_element_type=jnp.float32)
        o = o * pl.reciprocal(denom, approx=True)
    o_ref[0] = o.astype(o_ref.dtype)                                 # (H, tq, Dh)


# ---------------------------------------------------------------------------
# Kernel 3: output projection + LN1 + GELU-FFN + LN2 (all full-width matmuls).
# ---------------------------------------------------------------------------
def _outproj_ffn_kernel(compute_dtype, approx_recip,
                        x_ref, a_ref, wo_ref, bo_ref, ln1w_ref, ln1b_ref,
                        w1_ref, b1_ref, w2_ref, b2_ref, ln2w_ref, ln2b_ref,
                        o_ref):
    # Single full-width out-projection: contraction depth K = E.
    attn = jnp.dot(a_ref[0], wo_ref[...],
                   preferred_element_type=jnp.float32) + bo_ref[...]
    # TODO(synk): dropout treated as identity (eval-mode semantics).
    x1 = _layer_norm(x_ref[0] + attn, ln1w_ref[...], ln1b_ref[...])

    h = jnp.dot(x1.astype(compute_dtype), w1_ref[...],
                preferred_element_type=jnp.float32) + b1_ref[...]
    h = _gelu_exact(h, approx_recip)
    h = jnp.dot(h.astype(compute_dtype), w2_ref[...],
                preferred_element_type=jnp.float32) + b2_ref[...]

    x2 = _layer_norm(x1 + h, ln2w_ref[...], ln2b_ref[...])
    o_ref[0] = x2.astype(o_ref.dtype)


# ---------------------------------------------------------------------------
# Host-side helpers.
# ---------------------------------------------------------------------------
def _prepare_params(params, compute_dtype):
    """Pre-transpose to (in, out) layout; all biases full-width, f32."""
    E = params["w_out"].shape[0]
    return dict(
        wqkv=params["w_in"].T.astype(compute_dtype),          # (E, 3E) cols=[q|k|v]
        bqkv=params["b_in"].reshape(1, 3 * E).astype(jnp.float32),
        wo=params["w_out"].T.astype(compute_dtype),           # (E, E)
        bo=params["b_out"].reshape(1, E).astype(jnp.float32),
        ln1_w=params["ln1_w"].reshape(1, E).astype(jnp.float32),
        ln1_b=params["ln1_b"].reshape(1, E).astype(jnp.float32),
        w1=params["w1"].T.astype(compute_dtype),              # (E, 4E)
        b1=params["b1"].reshape(1, -1).astype(jnp.float32),
        w2=params["w2"].T.astype(compute_dtype),              # (4E, E)
        b2=params["b2"].reshape(1, E).astype(jnp.float32),
        ln2_w=params["ln2_w"].reshape(1, E).astype(jnp.float32),
        ln2_b=params["ln2_b"].reshape(1, E).astype(jnp.float32),
    )


def _physical_vmem_bytes():
    try:
        info = pltpu.get_tpu_info()
        cap = getattr(info, "vmem_capacity_bytes", None)
        if cap:
            return int(cap)
    except Exception:
        pass
    return 64 * 2 ** 20        # conservative (v7x-sized) fallback


def _vmem_limit(working_bytes):
    # No hard 32 MiB cap, no double head-room: ~25% margin over the working
    # set, clamped to ~90% of the physical VMEM of the current generation.
    cap = int(0.9 * _physical_vmem_bytes())
    return int(min(max(int(1.25 * working_bytes), 4 * 2 ** 20), cap))


def transformer_block(x, mask, params, num_heads, *,
                      compute_dtype=jnp.float32, tq=None, assume_causal=False):
    """Forward pass of the PyTorch TransformerBlock (dropout = identity)."""
    B, S, E = x.shape
    H = num_heads
    assert E % H == 0
    Dh = E // H
    F4 = 4 * E
    cb = jnp.dtype(compute_dtype).itemsize

    if tq is None:
        # Larger default tile on big-VMEM parts (v5e/v6e), smaller on v7x.
        tq_cap = 512 if _physical_vmem_bytes() >= 96 * 2 ** 20 else 256
        tq = min(S, tq_cap)
        while S % tq != 0:
            tq //= 2
    assert S % tq == 0, "sequence length must be divisible by the query tile"
    assert tq == S or tq % 8 == 0, "query tile must be a multiple of 8 (or == S)"
    nq = S // tq
    approx_recip = jnp.dtype(compute_dtype) != jnp.dtype(jnp.float32)

    p = _prepare_params(params, compute_dtype)
    par2 = ("parallel", "parallel")
    scale = 1.0 / math.sqrt(Dh)

    def run(single_buffer):
        def const_spec(shape):
            # Grid-invariant operands (weights / biases / LN params).
            n = len(shape)
            idx = lambda b, q, _n=n: (0,) * _n
            if single_buffer:
                return pl.BlockSpec(shape, idx,
                                    pipeline_mode=pl.Buffered(buffer_count=1))
            return pl.BlockSpec(shape, idx)

        wmul = 1 if single_buffer else 2

        # ---- 1) fused full-width QKV projection --------------------------
        qkv_working = (wmul * (E * 3 * E * cb + 3 * E * 4)
                       + 2 * (tq * E * 4 + tq * 3 * E * cb)
                       + 2 * tq * 3 * E * 4)
        qkv = pl.pallas_call(
            functools.partial(_qkv_proj_kernel, compute_dtype),
            out_shape=jax.ShapeDtypeStruct((B, S, 3 * E), compute_dtype),
            grid=(B, nq),
            in_specs=[pl.BlockSpec((1, tq, E), lambda b, q: (b, q, 0)),
                      const_spec((E, 3 * E)),
                      const_spec((1, 3 * E))],
            out_specs=pl.BlockSpec((1, tq, 3 * E), lambda b, q: (b, q, 0)),
            compiler_params=pltpu.CompilerParams(
                dimension_semantics=par2,
                vmem_limit_bytes=_vmem_limit(qkv_working)),
        )(x, p["wqkv"], p["bqkv"])

        # Head split / relayout outside the kernel (pure layout plumbing).
        qkv5 = qkv.reshape(B, S, 3, H, Dh)
        q = jnp.transpose(qkv5[:, :, 0], (0, 2, 1, 3))    # (B, H, S, Dh)
        k = jnp.transpose(qkv5[:, :, 1], (0, 2, 1, 3))
        v = jnp.transpose(qkv5[:, :, 2], (0, 2, 1, 3))

        # ---- 2) head-batched attention ------------------------------------
        attn_working = (2 * H * tq * Dh * cb               # q blocks
                        + 2 * 2 * H * S * Dh * cb          # k, v blocks
                        + 2 * H * tq * Dh * cb             # out blocks
                        + (0 if assume_causal else 2 * tq * S * 4)
                        + 3 * H * tq * S * 4               # scores / probs
                        + H * tq * Dh * 4)
        attn_in_specs = [
            pl.BlockSpec((1, H, tq, Dh), lambda b, qt: (b, 0, qt, 0)),
            pl.BlockSpec((1, H, S, Dh), lambda b, qt: (b, 0, 0, 0)),
            pl.BlockSpec((1, H, S, Dh), lambda b, qt: (b, 0, 0, 0)),
        ]
        attn_args = [q, k, v]
        if not assume_causal:
            attn_in_specs = ([pl.BlockSpec((tq, S), lambda b, qt: (qt, 0))]
                             + attn_in_specs)
            attn_args = [mask.astype(jnp.float32)] + attn_args
        attn_heads = pl.pallas_call(
            functools.partial(_attention_kernel, compute_dtype, scale, tq,
                              assume_causal),
            out_shape=jax.ShapeDtypeStruct((B, H, S, Dh), compute_dtype),
            grid=(B, nq),
            in_specs=attn_in_specs,
            out_specs=pl.BlockSpec((1, H, tq, Dh), lambda b, qt: (b, 0, qt, 0)),
            compiler_params=pltpu.CompilerParams(
                dimension_semantics=par2,
                vmem_limit_bytes=_vmem_limit(attn_working)),
        )(*attn_args)

        # Merge heads back to (B, S, E) outside the kernel (layout plumbing).
        attn_cat = jnp.transpose(attn_heads, (0, 2, 1, 3)).reshape(B, S, E)

        # ---- 3) out-proj + LN1 + GELU-FFN + LN2 ----------------------------
        ffn_working = (wmul * ((E * E + E * F4 + F4 * E) * cb + 12 * E * 4)
                       + 2 * (2 * tq * E * 4 + tq * E * cb)
                       + 2 * tq * F4 * 4 + 4 * tq * E * 4)
        out = pl.pallas_call(
            functools.partial(_outproj_ffn_kernel, compute_dtype, approx_recip),
            out_shape=jax.ShapeDtypeStruct((B, S, E), x.dtype),
            grid=(B, nq),
            in_specs=[pl.BlockSpec((1, tq, E), lambda b, qt: (b, qt, 0)),
                      pl.BlockSpec((1, tq, E), lambda b, qt: (b, qt, 0)),
                      const_spec((E, E)), const_spec((1, E)),
                      const_spec((1, E)), const_spec((1, E)),
                      const_spec((E, F4)), const_spec((1, F4)),
                      const_spec((F4, E)), const_spec((1, E)),
                      const_spec((1, E)), const_spec((1, E))],
            out_specs=pl.BlockSpec((1, tq, E), lambda b, qt: (b, qt, 0)),
            compiler_params=pltpu.CompilerParams(
                dimension_semantics=par2,
                vmem_limit_bytes=_vmem_limit(ffn_working)),
        )(x, attn_cat, p["wo"], p["bo"], p["ln1_w"], p["ln1_b"],
          p["w1"], p["b1"], p["w2"], p["b2"], p["ln2_w"], p["ln2_b"])
        return out

    try:
        return jax.block_until_ready(run(single_buffer=True))
    except Exception:
        # Fallback if single-buffering (pl.Buffered(1)) is not supported by the
        # installed jax / Mosaic version: rerun with default double buffering.
        return jax.block_until_ready(run(single_buffer=False))


# ---------------------------------------------------------------------------
# Pure-JAX f32 reference for the correctness check.
# ---------------------------------------------------------------------------
def ref_forward(x, mask, p, num_heads):
    B, S, E = x.shape
    H = num_heads
    Dh = E // H
    qkv = x @ p["w_in"].T + p["b_in"]
    q, k, v = jnp.split(qkv, 3, axis=-1)

    def heads(t):
        return t.reshape(B, S, H, Dh).transpose(0, 2, 1, 3)

    q, k, v = heads(q), heads(k), heads(v)
    s = jnp.einsum("bhqd,bhkd->bhqk", q, k) / jnp.sqrt(jnp.float32(Dh)) + mask
    pa = jax.nn.softmax(s, axis=-1)
    a = jnp.einsum("bhqk,bhkd->bhqd", pa, v).transpose(0, 2, 1, 3).reshape(B, S, E)
    a = a @ p["w_out"].T + p["b_out"]

    def ln(y, w, b):
        mu = y.mean(-1, keepdims=True)
        var = ((y - mu) ** 2).mean(-1, keepdims=True)
        return (y - mu) / jnp.sqrt(var + 1e-5) * w + b

    x1 = ln(x + a, p["ln1_w"], p["ln1_b"])
    h = jax.nn.gelu(x1 @ p["w1"].T + p["b1"], approximate=False)
    h = h @ p["w2"].T + p["b2"]
    return ln(x1 + h, p["ln2_w"], p["ln2_b"])


if __name__ == "__main__":
    # Small shapes; S=16 with TQ=8 exercises the multi-query-tile path and the
    # batch grid axis on all three kernels.
    B, S, E, H = 2, 16, 32, 4
    TQ = 8
    F4 = 4 * E

    key = jax.random.PRNGKey(0)
    ks = jax.random.split(key, 8)

    x = jax.random.normal(ks[0], (B, S, E), jnp.float32)
    # Causal additive mask (0 on allowed positions, large negative otherwise).
    mask = jnp.where(jnp.tril(jnp.ones((S, S), dtype=bool)), 0.0, -1e9).astype(jnp.float32)

    params = {
        "w_in":  0.05 * jax.random.normal(ks[1], (3 * E, E), jnp.float32),
        "b_in":  0.01 * jax.random.normal(ks[2], (3 * E,), jnp.float32),
        "w_out": 0.05 * jax.random.normal(ks[3], (E, E), jnp.float32),
        "b_out": jnp.zeros((E,), jnp.float32),
        "ln1_w": jnp.ones((E,), jnp.float32),
        "ln1_b": jnp.zeros((E,), jnp.float32),
        "w1":    0.05 * jax.random.normal(ks[4], (F4, E), jnp.float32),
        "b1":    0.01 * jax.random.normal(ks[5], (F4,), jnp.float32),
        "w2":    0.05 * jax.random.normal(ks[6], (E, F4), jnp.float32),
        "b2":    0.01 * jax.random.normal(ks[7], (E,), jnp.float32),
        "ln2_w": jnp.ones((E,), jnp.float32),
        "ln2_b": jnp.zeros((E,), jnp.float32),
    }

    ref = ref_forward(x, mask, params, num_heads=H)

    # Exact f32 path with the mask supplied as an input tensor: strict parity.
    out_f32 = transformer_block(x, mask, params, num_heads=H,
                                tq=TQ, compute_dtype=jnp.float32)
    out_f32 = jax.block_until_ready(out_f32)
    assert out_f32.shape == (B, S, E)
    assert jnp.allclose(out_f32, ref, atol=1e-4, rtol=1e-4), \
        "f32 kernel mismatch vs pure-JAX reference"

    # Mixed-precision path: bf16 matmul inputs + bf16 EUP exp, f32 statistics,
    # causal mask generated in-kernel (no mask DMA).  Looser tolerance.
    out_bf16 = transformer_block(x, mask, params, num_heads=H, tq=TQ,
                                 compute_dtype=jnp.bfloat16, assume_causal=True)
    out_bf16 = jax.block_until_ready(out_bf16)
    max_err = jnp.max(jnp.abs(out_bf16.astype(jnp.float32) - ref))
    assert max_err < 7.5e-2, f"bf16 kernel mismatch vs reference (max abs err {max_err})"

    print("KERNEL_OK")
</pallas_src>

<mosaic_0001>
module attributes {stable_mosaic.version = 11 : i64} {
  func.func @_qkv_proj_kernel(%arg0: i32, %arg1: i32, %arg2: memref<1x8x32xf32, #tpu.memory_space<vmem>>, %arg3: memref<32x96xf32, #tpu.memory_space<vmem>>, %arg4: memref<1x96xf32, #tpu.memory_space<vmem>>, %arg5: memref<1x8x96xf32, #tpu.memory_space<vmem>>) attributes {dimension_semantics = [#tpu.dimension_semantics<parallel>, #tpu.dimension_semantics<parallel>], iteration_bounds = array<i64: 2, 2>, scalar_prefetch = 0 : i64, scratch_operands = 0 : i64, tpu.core_type = #tpu.core_type<tc>, window_params = [{transform_indices = @transform_0, window_bounds = array<i64: 1, 8, 32>}, {pipeline_mode = #tpu.pipeline_mode<synchronous>, transform_indices = @transform_1, window_bounds = array<i64: 32, 96>}, {pipeline_mode = #tpu.pipeline_mode<synchronous>, transform_indices = @transform_2, window_bounds = array<i64: 1, 96>}, {transform_indices = @transform_3, window_bounds = array<i64: 1, 8, 96>}]} {
    %c0 = arith.constant 0 : index
    %c0_0 = arith.constant 0 : index
    %c0_1 = arith.constant 0 : index
    %0 = vector.load %arg2[%c0, %c0_0, %c0_1] : memref<1x8x32xf32, #tpu.memory_space<vmem>>, vector<1x8x32xf32>
    %1 = vector.shape_cast %0 : vector<1x8x32xf32> to vector<8x32xf32>
    %c0_2 = arith.constant 0 : index
    %c0_3 = arith.constant 0 : index
    %2 = vector.load %arg3[%c0_2, %c0_3] : memref<32x96xf32, #tpu.memory_space<vmem>>, vector<32x96xf32>
    %cst = arith.constant dense<0.000000e+00> : vector<8x96xf32>
    %3 = tpu.matmul %1, %2, %cst {dimension_numbers = #tpu.dot_dimension_numbers<[1], [0], [0], [1], [0, 0, 1, 1], [], []>} : vector<8x32xf32>, vector<32x96xf32>, vector<8x96xf32> -> vector<8x96xf32>
    %c0_4 = arith.constant 0 : index
    %c0_5 = arith.constant 0 : index
    %4 = vector.load %arg4[%c0_4, %c0_5] : memref<1x96xf32, #tpu.memory_space<vmem>>, vector<1x96xf32>
    %5 = vector.broadcast %4 : vector<1x96xf32> to vector<8x96xf32>
    %6 = arith.addf %3, %5 : vector<8x96xf32>
    %c0_6 = arith.constant 0 : index
    %c0_7 = arith.constant 0 : index
    %c0_8 = arith.constant 0 : index
    %7 = vector.load %arg5[%c0_6, %c0_7, %c0_8] : memref<1x8x96xf32, #tpu.memory_space<vmem>>, vector<1x8x96xf32>
    %8 = vector.shape_cast %7 : vector<1x8x96xf32> to vector<8x96xf32>
    %9 = vector.shape_cast %6 : vector<8x96xf32> to vector<1x8x96xf32>
    tpu.vector_store %arg5[%c0_6, %c0_7, %c0_8], %9 {strides = array<i32>} : memref<1x8x96xf32, #tpu.memory_space<vmem>>, vector<1x8x96xf32>,
    return
  }
  func.func @transform_0(%arg0: i32, %arg1: i32) -> (i32, i32, i32) {
    %c0_i32 = arith.constant 0 : i32
    %c0_i32_0 = arith.constant 0 : i32
    return %arg0, %arg1, %c0_i32 : i32, i32, i32
  }
  func.func @transform_1(%arg0: i32, %arg1: i32) -> (i32, i32) {
    %c0_i32 = arith.constant 0 : i32
    %c0_i32_0 = arith.constant 0 : i32
    %c0_i32_1 = arith.constant 0 : i32
    return %c0_i32, %c0_i32_0 : i32, i32
  }
  func.func @transform_2(%arg0: i32, %arg1: i32) -> (i32, i32) {
    %c0_i32 = arith.constant 0 : i32
    %c0_i32_0 = arith.constant 0 : i32
    %c0_i32_1 = arith.constant 0 : i32
    return %c0_i32, %c0_i32_0 : i32, i32
  }
  func.func @transform_3(%arg0: i32, %arg1: i32) -> (i32, i32, i32) {
    %c0_i32 = arith.constant 0 : i32
    %c0_i32_0 = arith.constant 0 : i32
    return %arg0, %arg1, %c0_i32 : i32, i32, i32
  }
}

module attributes {stable_mosaic.version = 11 : i64} {
  func.func @_qkv_proj_kernel(%arg0: i32, %arg1: i32, %arg2: memref<1x8x32xf32, #tpu.memory_space<vmem>>, %arg3: memref<32x96xf32, #tpu.memory_space<vmem>>, %arg4: memref<1x96xf32, #tpu.memory_space<vmem>>, %arg5: memref<1x8x96xf32, #tpu.memory_space<vmem>>) attributes {dimension_semantics = [#tpu.dimension_semantics<parallel>, #tpu.dimension_semantics<parallel>], iteration_bounds = array<i64: 2, 2>, scalar_prefetch = 0 : i64, scratch_operands = 0 : i64, tpu.core_type = #tpu.core_type<tc>, window_params = [{transform_indices = @transform_0, window_bounds = array<i64: 1, 8, 32>}, {pipeline_mode = #tpu.pipeline_mode<synchronous>, transform_indices = @transform_1, window_bounds = array<i64: 32, 96>}, {pipeline_mode = #tpu.pipeline_mode<synchronous>, transform_indices = @transform_2, window_bounds = array<i64: 1, 96>}, {transform_indices = @transform_3, window_bounds = array<i64: 1, 8, 96>}]} {
    %c0 = arith.constant 0 : index
    %c0_0 = arith.constant 0 : index
    %c0_1 = arith.constant 0 : index
    %0 = vector.load %arg2[%c0, %c0_0, %c0_1] : memref<1x8x32xf32, #tpu.memory_space<vmem>>, vector<1x8x32xf32>
    %1 = vector.shape_cast %0 : vector<1x8x32xf32> to vector<8x32xf32>
    %c0_2 = arith.constant 0 : index
    %c0_3 = arith.constant 0 : index
    %2 = vector.load %arg3[%c0_2, %c0_3] : memref<32x96xf32, #tpu.memory_space<vmem>>, vector<32x96xf32>
    %cst = arith.constant dense<0.000000e+00> : vector<8x96xf32>
    %3 = tpu.matmul %1, %2, %cst {dimension_numbers = #tpu.dot_dimension_numbers<[1], [0], [0], [1], [0, 0, 1, 1], [], []>} : vector<8x32xf32>, vector<32x96xf32>, vector<8x96xf32> -> vector<8x96xf32>
    %c0_4 = arith.constant 0 : index
    %c0_5 = arith.constant 0 : index
    %4 = vector.load %arg4[%c0_4, %c0_5] : memref<1x96xf32, #tpu.memory_space<vmem>>, vector<1x96xf32>
    %5 = vector.broadcast %4 : vector<1x96xf32> to vector<8x96xf32>
    %6 = arith.addf %3, %5 : vector<8x96xf32>
    %c0_6 = arith.constant 0 : index
    %c0_7 = arith.constant 0 : index
    %c0_8 = arith.constant 0 : index
    %7 = vector.load %arg5[%c0_6, %c0_7, %c0_8] : memref<1x8x96xf32, #tpu.memory_space<vmem>>, vector<1x8x96xf32>
    %8 = vector.shape_cast %7 : vector<1x8x96xf32> to vector<8x96xf32>
    %9 = vector.shape_cast %6 : vector<8x96xf32> to vector<1x8x96xf32>
    tpu.vector_store %arg5[%c0_6, %c0_7, %c0_8], %9 {strides = array<i32>} : memref<1x8x96xf32, #tpu.memory_space<vmem>>, vector<1x8x96xf32>,
    return
  }
  func.func @transform_0(%arg0: i32, %arg1: i32) -> (i32, i32, i32) {
    %c0_i32 = arith.constant 0 : i32
    %c0_i32_0 = arith.constant 0 : i32
    return %arg0, %arg1, %c0_i32 : i32, i32, i32
  }
  func.func @transform_1(%arg0: i32, %arg1: i32) -> (i32, i32) {
    %c0_i32 = arith.constant 0 : i32
    %c0_i32_0 = arith.constant 0 : i32
    %c0_i32_1 = arith.constant 0 : i32
    return %c0_i32, %c0_i32_0 : i32, i32
  }
  func.func @transform_2(%arg0: i32, %arg1: i32) -> (i32, i32) {
    %c0_i32 = arith.constant 0 : i32
    %c0_i32_0 = arith.constant 0 : i32
    %c0_i32_1 = arith.constant 0 : i32
    return %c0_i32, %c0_i32_0 : i32, i32
  }
  func.func @transform_3(%arg0: i32, %arg1: i32) -> (i32, i32, i32) {
    %c0_i32 = arith.constant 0 : i32
    %c0_i32_0 = arith.constant 0 : i32
    return %arg0, %arg1, %c0_i32 : i32, i32, i32
  }
}

</mosaic_0001>

<llo_original>
// kernel: tpu_custom_call.1
$region0: #{tpu_custom_call.1}
  #allocation0 [shape = 'u32[]', space=smem, size = 0x4, offset = 0x4, fixed_abs, tag = 'smem constant byte address 0x4 - core index']
  #allocation1 [shape = 'u32[72,128]{1,0:T(1,128)}', space=vmem, size = 0x9000, scoped, tag = 'internal scratch']
  %s0 = inlined_call_operand.hbm [shape: f32[2,16,32], index: 0, kind: input, shape index: {}]
  %s1 = inlined_call_operand.hbm [shape: f32[32,96], index: 1, kind: input, shape index: {}]
  %s2 = inlined_call_operand.vmem [shape: f32[1,96], index: 2, kind: input, shape index: {}]
  %s3 = inlined_call_operand.hbm [shape: f32[2,16,96], index: 3, kind: output, shape index: {}]
  %s4 = sld [smem:[#allocation0]]
  $region53: #{tpu_custom_call.1} parent=0
    _
  %s6 = ssub.s32 1, %s4
  %s7 = scalar_select 0, %s6, %s4
  $region1: #{tpu_custom_call.1} parent=0
    #allocation2 [shape = 'u8[8192]{0}', space=vmem, size = 0x2000, scoped, tag = 'input window, operand 0']
    #allocation3 [shape = 's32[2]{0}', space=sflag, size = 0x8, scoped, tag = 'scoped memory for tpu_custom_call.1']
    #allocation4 [shape = 's32[2]{0}', space=sflag, size = 0x8, scoped, tag = 'scoped memory for tpu_custom_call.1']
    #allocation5 [shape = 'u8[16384]{0}', space=vmem, size = 0x4000, scoped, tag = 'input window, operand 1, single buffered']
    #allocation6 [shape = 's32[1]{0}', space=sflag, size = 0x4, scoped, tag = 'scoped memory for tpu_custom_call.1']
    #allocation7 [shape = 'u8[8192]{0}', space=vmem, size = 0x2000, scoped, tag = 'output window, operand 0']
    %8 = vsyncpa [#allocation3], 0
    %s9 = scalar_lea.sflag [#allocation3], 1
    %10 = vsyncpa %s9, 0
    %11 = vsyncpa [#allocation6], 0
    %12 = vsyncpa [#allocation4], 0
    %s13 = scalar_lea.sflag [#allocation4], 1
    %14 = vsyncpa %s13, 0
    loop: start=0, step=1, limit=6
    $region2: #{tpu_custom_call.1} parent=1 // loop_pre_header
      _
    $region3: #{tpu_custom_call.1} parent=1 // loop_header
      %s16 = sphi 0, %s20
      %p17 = scmp.ge.s32.totalorder %s16, 6
      %s23 = sphi 0, %s35
      %s24 = sphi 0, %s31
      %s25 = sphi 0, %s23
      %s26 = sphi 0, %s24
      %s27 = sphi 0, %s25
      %s28 = sphi 0, %s26
      %s40 = sphi 0, %s42
      %s43 = sphi 0, %s40
      %s44 = sphi 0, %s43
      %s60 = sphi 0, %s44
      %s64 = sphi 0, %s64
      %s66 = sphi 0, %s64
      %s67 = sphi 0, %s66
      %s81 = sphi 0, %s67
      %s85 = sphi 0, %s85
      %s87 = sphi 0, %s85
      %s88 = sphi 0, %s87
      %s102 = sphi 0, %s88
      %s110 = sphi 0, %s112
      %s113 = sphi 0, %s110
      %s114 = sphi 0, %s113
      %s130 = sphi 0, %s114
    $region4: #{tpu_custom_call.1} parent=1 // loop_header_branch
      %19 = sbr.rel (%p17) target = $region8
    $region5: #{tpu_custom_call.1} parent=1 // loop_body
      %s21 = ssub.s32 %s16, 1
      %s22 = ssub.s32 %s16, 2
      %s29 = sadd.s32 1, %s24
      %p30 = scmp.ge.s32.totalorder %s29, 2
      %s31 = scalar_select %p30, 0, %s29
      %s32 = sadd.s32 1, %s23
      %s33 = scalar_select %p30, %s32, %s23
      %p34 = scmp.ge.s32.totalorder %s33, 2
      %s35 = scalar_select %p34, 0, %s33
      %s36 = ssub.s32 %s23, %s35
      %s37 = ssub.s32 %s24, %s31
      %s38 = sor.u32 %s36, %s37
      %p39 = scmp.eq.s32.totalorder %s38, 0
      %s41 = sadd.s32 %s40, 1
      %s42 = scalar_select %p39, %s40, %s41
      %p45 = pneg %p39
      %p46 = scmp.eq.s32.totalorder %s16, 3
      %p47 = por %p45, %p46
      %p48 = scmp.ne.s32.totalorder %s40, %s43
      %p49 = scmp.eq.s32.totalorder %s16, 0
      %p50 = por %p48, %p49
      %p51 = scmp.ne.s32.totalorder %s40, %s43
      %p52 = scmp.eq.s32.totalorder %s21, 3
      %p53 = por %p51, %p52
      %p54 = scmp.ne.s32.totalorder %s43, %s44
      %p55 = scmp.eq.s32.totalorder %s21, 0
      %p56 = por %p54, %p55
      %p57 = scmp.ne.s32.totalorder %s43, %s44
      %p58 = scmp.eq.s32.totalorder %s22, 3
      %p59 = por %p57, %p58
      %p61 = scmp.ne.s32.totalorder %s44, %s60
      %p62 = scmp.eq.s32.totalorder %s22, 0
      %p63 = por %p61, %p62
      %s65 = sadd.s32 %s64, 1
      %p68 = scmp.eq.s32.totalorder %s16, 3
      %p69 = scmp.ne.s32.totalorder %s64, %s66
      %p70 = scmp.eq.s32.totalorder %s16, 0
      %p71 = por %p69, %p70
      %p72 = scmp.ne.s32.totalorder %s64, %s66
      %p73 = scmp.eq.s32.totalorder %s21, 3
      %p74 = por %p72, %p73
      %p75 = scmp.ne.s32.totalorder %s66, %s67
      %p76 = scmp.eq.s32.totalorder %s21, 0
      %p77 = por %p75, %p76
      %p78 = scmp.ne.s32.totalorder %s66, %s67
      %p79 = scmp.eq.s32.totalorder %s22, 3
      %p80 = por %p78, %p79
      %p82 = scmp.ne.s32.totalorder %s67, %s81
      %p83 = scmp.eq.s32.totalorder %s22, 0
      %p84 = por %p82, %p83
      %s86 = sadd.s32 %s85, 1
      %p89 = scmp.eq.s32.totalorder %s16, 3
      %p90 = scmp.ne.s32.totalorder %s85, %s87
      %p91 = scmp.eq.s32.totalorder %s16, 0
      %p92 = por %p90, %p91
      %p93 = scmp.ne.s32.totalorder %s85, %s87
      %p94 = scmp.eq.s32.totalorder %s21, 3
      %p95 = por %p93, %p94
      %p96 = scmp.ne.s32.totalorder %s87, %s88
      %p97 = scmp.eq.s32.totalorder %s21, 0
      %p98 = por %p96, %p97
      %p99 = scmp.ne.s32.totalorder %s87, %s88
      %p100 = scmp.eq.s32.totalorder %s22, 3
      %p101 = por %p99, %p100
      %p103 = scmp.ne.s32.totalorder %s88, %s102
      %p104 = scmp.eq.s32.totalorder %s22, 0
      %p105 = por %p103, %p104
      %s106 = ssub.s32 %s23, %s35
      %s107 = ssub.s32 %s24, %s31
      %s108 = sor.u32 %s106, %s107
      %p109 = scmp.eq.s32.totalorder %s108, 0
      %s111 = sadd.s32 %s110, 1
      %s112 = scalar_select %p109, %s110, %s111
      %p115 = pneg %p109
      %p116 = scmp.eq.s32.totalorder %s16, 3
      %p117 = por %p115, %p116
      %p118 = scmp.ne.s32.totalorder %s110, %s113
      %p119 = scmp.eq.s32.totalorder %s16, 0
      %p120 = por %p118, %p119
      %p121 = scmp.ne.s32.totalorder %s110, %s113
      %p122 = scmp.eq.s32.totalorder %s21, 3
      %p123 = por %p121, %p122
      %p124 = scmp.ne.s32.totalorder %s113, %s114
      %p125 = scmp.eq.s32.totalorder %s21, 0
      %p126 = por %p124, %p125
      %p127 = scmp.ne.s32.totalorder %s113, %s114
      %p128 = scmp.eq.s32.totalorder %s22, 3
      %p129 = por %p127, %p128
      %p131 = scmp.ne.s32.totalorder %s114, %s130
      %p132 = scmp.eq.s32.totalorder %s22, 0
      %p133 = por %p131, %p132
      %p134 = scmp.le.s32.totalorder 1, %s16
      %p135 = scmp.lt.s32.totalorder %s16, 5
      %p136 = pnand %p134, %p135
      %p137 = pneg %p136
      // Predicated region
      $region9: #{tpu_custom_call.1} parent=5 // pred_check
        _
      $region10: #{tpu_custom_call.1} parent=5 // pred_check_branch
        %139 = sbr.rel (%p136) target = $region12
      $region11: #{tpu_custom_call.1} parent=5 // pred_region
        %s140 = ssub.s32 %s16, 1
        // Predicated region
        $region13: #{tpu_custom_call.1} parent=11 // pred_check
          %p141 = pneg %p77
        $region14: #{tpu_custom_call.1} parent=11 // pred_check_branch
          %143 = sbr.rel (%p141) target = $region16
        $region15: #{tpu_custom_call.1} parent=11 // pred_region
          %145 = vsyncadd [#allocation6], 0
          %s146 = sshll.u32 %s1, 4
          %s147 = int_to_ptr.hbm [resolvable:$true] %s146
          %s148 = sshll.u32 [#allocation5], 4
          %s149 = int_to_ptr.vmem [resolvable:$true] %s148
          %154 = dma.hbm_to_vmem [thread:$0]  %s147, 512, %s149, [#allocation6], 128, 128, 8
        $region16: #{tpu_custom_call.1} parent=11 // pred_fallthru
          _
        // Predicated region
        $region17: #{tpu_custom_call.1} parent=11 // pred_check
          %p155 = pneg %p98
        $region18: #{tpu_custom_call.1} parent=11 // pred_check_branch
          %157 = sbr.rel (%p155) target = $region20
        $region19: #{tpu_custom_call.1} parent=11 // pred_region
          _
        $region20: #{tpu_custom_call.1} parent=11 // pred_fallthru
          _
      $region12: #{tpu_custom_call.1} parent=5 // pred_fallthru
        _
      %p158 = scmp.lt.s32.totalorder %s16, 4
      // Predicated region
      $region21: #{tpu_custom_call.1} parent=5 // pred_check
        %p159 = pneg %p158
      $region22: #{tpu_custom_call.1} parent=5 // pred_check_branch
        %161 = sbr.rel (%p159) target = $region24
      $region23: #{tpu_custom_call.1} parent=5 // pred_region
        // Predicated region
        $region25: #{tpu_custom_call.1} parent=23 // pred_check
          %p162 = pneg %p50
        $region26: #{tpu_custom_call.1} parent=23 // pred_check_branch
          %164 = sbr.rel (%p162) target = $region28
        $region27: #{tpu_custom_call.1} parent=23 // pred_region
          %s165 = sand.u32 %s40, 1
          %s166 = scalar_lea.sflag [#allocation3], %s165
          %s167 = sand.u32 %s40, 1
          %s168 = smul.addr %s167, 8
          %s169 = scalar_lea.vmem [#allocation2], %s168
          %171 = vsyncadd %s166, 0
          %s172 = smul.addr %s23, 2
          %s173 = sadd.s32 %s24, %s172
          %s174 = smul.addr %s173, 8
          %s175 = scalar_lea.hbm %s0, %s174
          %s177 = sshll.u32 %s175, 4
          %s178 = int_to_ptr.hbm [resolvable:$true] %s177
          %s179 = sshll.u32 %s169, 4
          %s180 = int_to_ptr.vmem [resolvable:$true] %s179
          %182 = dma.hbm_to_vmem [thread:$0]  %s178, 128, %s180, %s166
        $region28: #{tpu_custom_call.1} parent=23 // pred_fallthru
          _
      $region24: #{tpu_custom_call.1} parent=5 // pred_fallthru
        _
      %p183 = scmp.le.s32.totalorder 1, %s16
      %p184 = scmp.lt.s32.totalorder %s16, 5
      %p185 = pnand %p183, %p184
      %p186 = pneg %p185
      // Predicated region
      $region29: #{tpu_custom_call.1} parent=5 // pred_check
        _
      $region30: #{tpu_custom_call.1} parent=5 // pred_check_branch
        %188 = sbr.rel (%p185) target = $region32
      $region31: #{tpu_custom_call.1} parent=5 // pred_region
        %s189 = ssub.s32 %s16, 1
        %s190 = sand.u32 %s43, 1
        %s191 = scalar_lea.sflag [#allocation3], %s190
        %s192 = sand.u32 %s43, 1
        %s193 = smul.addr %s192, 8
        %s194 = scalar_lea.vmem [#allocation2], %s193
        // Predicated region
        $region33: #{tpu_custom_call.1} parent=31 // pred_check
          %p195 = pneg %p56
        $region34: #{tpu_custom_call.1} parent=31 // pred_check_branch
          %197 = sbr.rel (%p195) target = $region36
        $region35: #{tpu_custom_call.1} parent=31 // pred_region
          %199 = dma.done %s191, 128
        $region36: #{tpu_custom_call.1} parent=31 // pred_fallthru
          _
        // Predicated region
        $region37: #{tpu_custom_call.1} parent=31 // pred_check
          %p200 = pneg %p77
        $region38: #{tpu_custom_call.1} parent=31 // pred_check_branch
          %202 = sbr.rel (%p200) target = $region40
        $region39: #{tpu_custom_call.1} parent=31 // pred_region
          %204 = dma.done [#allocation6], 512
        $region40: #{tpu_custom_call.1} parent=31 // pred_fallthru
          _
        %s205 = sand.u32 %s43, 1
        %s206 = scalar_lea.sflag [#allocation3], %s205
        %s207 = sand.u32 %s43, 1
        %s208 = smul.addr %s207, 8
        %s209 = scalar_lea.vmem [#allocation2], %s208
        %p210 = pneg %p56
        %p211 = pneg %p53
        %p212 = pneg %p77
        %p213 = pneg %p74
        %p214 = pneg %p98
        %p215 = pneg %p95
        %p216 = pneg %p126
        %p217 = pneg %p123
        %s218 = sand.u32 %s113, 1
        %s219 = scalar_lea.sflag [#allocation4], %s218
        %s220 = sand.u32 %s113, 1
        %s221 = smul.addr %s220, 8
        %s222 = scalar_lea.vmem [#allocation7], %s221
        %v223 = vld [vmem:[%s194] sm:$0xff]
        %v224 = vld [vmem:[#allocation5] sm:$0xff]
        %v225 = vld [vmem:[#allocation5 + $0x8] sm:$0xff]
        %v226 = vld [vmem:[#allocation5 + $0x10] sm:$0xff]
        %v227 = vld [vmem:[#allocation5 + $0x18] sm:$0xff]
        %v228 = vld [vmem:[%s2] sm:$0x1]
        %v230 = vperm.slane %v228, 0
        %vm232 = vcmask 261120
        %v234 = vsel %vm232, %v223, 0
        %236 = vmatpush.msra.mxu0 0.0
        %237 = vmatpush.msra.mxu0 0.0
        %238 = vmatpush.msra.mxu0 0.0
        %239 = vmatpush.msra.mxu0 0.0
        %240 = vmatpush.msra.mxu0 0.0
        %241 = vmatpush.msra.mxu0 0.0
        %242 = vmatpush.msra.mxu0 0.0
        %243 = vmatpush.msra.mxu0 0.0
        %244 = vmatpush.msra.mxu0 0.0
        %245 = vmatpush.msra.mxu0 0.0
        %246 = vmatpush.msra.mxu0 0.0
        %247 = vmatpush.msra.mxu0 0.0
        %248 = vmatpush.msra.mxu0 %v227
        %249 = vmatpush.msra.mxu0 %v226
        %250 = vmatpush.msra.mxu0 %v225
        %251 = vmatpush.msra.mxu0 %v224
        %252 = vmatmul.f32.gmra.mxu0 %v234
        %v253 = vpop.f32.mrf.mxu0
        %v254 = vadd.f32 %v230, %v253
        %255 = vdwg.mxu0
        %vm256 = vcmask 785408
        %257 = vst.msk [vmem:[%s222] sm:$0xff] %vm256, %v254
        %s258 = sand.u32 %s113, 1
        %s259 = scalar_lea.sflag [#allocation4], %s258
        %s260 = sand.u32 %s113, 1
        %s261 = smul.addr %s260, 8
        %s262 = scalar_lea.vmem [#allocation7], %s261
        // Predicated region
        $region41: #{tpu_custom_call.1} parent=31 // pred_check
          %p263 = pneg %p123
        $region42: #{tpu_custom_call.1} parent=31 // pred_check_branch
          %265 = sbr.rel (%p263) target = $region44
        $region43: #{tpu_custom_call.1} parent=31 // pred_region
          %267 = vsyncadd %s259, 0
          %s268 = smul.addr %s25, 2
          %s269 = sadd.s32 %s26, %s268
          %s270 = smul.addr %s269, 8
          %s271 = scalar_lea.hbm %s3, %s270
          %s273 = sshll.u32 %s262, 4
          %s274 = int_to_ptr.vmem [resolvable:$true] %s273
          %s275 = sshll.u32 %s271, 4
          %s276 = int_to_ptr.hbm [resolvable:$true] %s275
          %278 = dma.vmem_to_hbm [thread:$0]  %s274, 128, %s276, %s259
        $region44: #{tpu_custom_call.1} parent=31 // pred_fallthru
          _
      $region32: #{tpu_custom_call.1} parent=5 // pred_fallthru
        _
      %p279 = scmp.le.s32.totalorder 2, %s16
      // Predicated region
      $region45: #{tpu_custom_call.1} parent=5 // pred_check
        %p280 = pneg %p279
      $region46: #{tpu_custom_call.1} parent=5 // pred_check_branch
        %282 = sbr.rel (%p280) target = $region48
      $region47: #{tpu_custom_call.1} parent=5 // pred_region
        %s283 = ssub.s32 %s16, 2
        // Predicated region
        $region49: #{tpu_custom_call.1} parent=47 // pred_check
          %p284 = pneg %p129
        $region50: #{tpu_custom_call.1} parent=47 // pred_check_branch
          %286 = sbr.rel (%p284) target = $region52
        $region51: #{tpu_custom_call.1} parent=47 // pred_region
          %s287 = sand.u32 %s114, 1
          %s288 = scalar_lea.sflag [#allocation4], %s287
          %s289 = sand.u32 %s114, 1
          %s290 = smul.addr %s289, 8
          %s291 = scalar_lea.vmem [#allocation7], %s290
          %293 = dma.done %s288, 128
        $region52: #{tpu_custom_call.1} parent=47 // pred_fallthru
          _
      $region48: #{tpu_custom_call.1} parent=5 // pred_fallthru
        _
    $region6: #{tpu_custom_call.1} parent=1 // loop_footer
      %s20 = sadd.s32 1, %s16
    $region7: #{tpu_custom_call.1} parent=1 // loop_footer_branch
      %15 = sbr.rel target = $region3
    $region8: #{tpu_custom_call.1} parent=1 // loop_exit
      _
    %294 = vsyncpa [#allocation3], 1
    %s295 = scalar_lea.sflag [#allocation3], 1
    %296 = vsyncpa %s295, 1
    %297 = vsyncpa [#allocation6], 1
    %298 = vsyncpa [#allocation4], 1
    %s299 = scalar_lea.sflag [#allocation4], 1
    %300 = vsyncpa %s299, 1

// kernel: tpu_custom_call.1
$region0: #{tpu_custom_call.1}
  #allocation0 [shape = 'u32[]', space=smem, size = 0x4, offset = 0x4, fixed_abs, tag = 'smem constant byte address 0x4 - core index']
  #allocation1 [shape = 'u32[72,128]{1,0:T(1,128)}', space=vmem, size = 0x9000, scoped, tag = 'internal scratch']
  %s0 = inlined_call_operand.hbm [shape: f32[2,16,32], index: 0, kind: input, shape index: {}]
  %s1 = inlined_call_operand.hbm [shape: f32[32,96], index: 1, kind: input, shape index: {}]
  %s2 = inlined_call_operand.vmem [shape: f32[1,96], index: 2, kind: input, shape index: {}]
  %s3 = inlined_call_operand.hbm [shape: f32[2,16,96], index: 3, kind: output, shape index: {}]
  %s4 = sld [smem:[#allocation0]]
  $region53: #{tpu_custom_call.1} parent=0
    _
  %s6 = ssub.s32 1, %s4
  %s7 = scalar_select 0, %s6, %s4
  $region1: #{tpu_custom_call.1} parent=0
    #allocation2 [shape = 'u8[8192]{0}', space=vmem, size = 0x2000, scoped, tag = 'input window, operand 0']
    #allocation3 [shape = 's32[2]{0}', space=sflag, size = 0x8, scoped, tag = 'scoped memory for tpu_custom_call.1']
    #allocation4 [shape = 's32[2]{0}', space=sflag, size = 0x8, scoped, tag = 'scoped memory for tpu_custom_call.1']
    #allocation5 [shape = 'u8[16384]{0}', space=vmem, size = 0x4000, scoped, tag = 'input window, operand 1, single buffered']
    #allocation6 [shape = 's32[1]{0}', space=sflag, size = 0x4, scoped, tag = 'scoped memory for tpu_custom_call.1']
    #allocation7 [shape = 'u8[8192]{0}', space=vmem, size = 0x2000, scoped, tag = 'output window, operand 0']
    %8 = vsyncpa [#allocation3], 0
    %s9 = scalar_lea.sflag [#allocation3], 1
    %10 = vsyncpa %s9, 0
    %11 = vsyncpa [#allocation6], 0
    %12 = vsyncpa [#allocation4], 0
    %s13 = scalar_lea.sflag [#allocation4], 1
    %14 = vsyncpa %s13, 0
    loop: start=0, step=1, limit=6
    $region2: #{tpu_custom_call.1} parent=1 // loop_pre_header
      _
    $region3: #{tpu_custom_call.1} parent=1 // loop_header
      %s16 = sphi 0, %s20
      %p17 = scmp.ge.s32.totalorder %s16, 6
      %s23 = sphi 0, %s35
      %s24 = sphi 0, %s31
      %s25 = sphi 0, %s23
      %s26 = sphi 0, %s24
      %s27 = sphi 0, %s25
      %s28 = sphi 0, %s26
      %s40 = sphi 0, %s42
      %s43 = sphi 0, %s40
      %s44 = sphi 0, %s43
      %s60 = sphi 0, %s44
      %s64 = sphi 0, %s64
      %s66 = sphi 0, %s64
      %s67 = sphi 0, %s66
      %s81 = sphi 0, %s67
      %s85 = sphi 0, %s85
      %s87 = sphi 0, %s85
      %s88 = sphi 0, %s87
      %s102 = sphi 0, %s88
      %s110 = sphi 0, %s112
      %s113 = sphi 0, %s110
      %s114 = sphi 0, %s113
      %s130 = sphi 0, %s114
    $region4: #{tpu_custom_call.1} parent=1 // loop_header_branch
      %19 = sbr.rel (%p17) target = $region8
    $region5: #{tpu_custom_call.1} parent=1 // loop_body
      %s21 = ssub.s32 %s16, 1
      %s22 = ssub.s32 %s16, 2
      %s29 = sadd.s32 1, %s24
      %p30 = scmp.ge.s32.totalorder %s29, 2
      %s31 = scalar_select %p30, 0, %s29
      %s32 = sadd.s32 1, %s23
      %s33 = scalar_select %p30, %s32, %s23
      %p34 = scmp.ge.s32.totalorder %s33, 2
      %s35 = scalar_select %p34, 0, %s33
      %s36 = ssub.s32 %s23, %s35
      %s37 = ssub.s32 %s24, %s31
      %s38 = sor.u32 %s36, %s37
      %p39 = scmp.eq.s32.totalorder %s38, 0
      %s41 = sadd.s32 %s40, 1
      %s42 = scalar_select %p39, %s40, %s41
      %p45 = pneg %p39
      %p46 = scmp.eq.s32.totalorder %s16, 3
      %p47 = por %p45, %p46
      %p48 = scmp.ne.s32.totalorder %s40, %s43
      %p49 = scmp.eq.s32.totalorder %s16, 0
      %p50 = por %p48, %p49
      %p51 = scmp.ne.s32.totalorder %s40, %s43
      %p52 = scmp.eq.s32.totalorder %s21, 3
      %p53 = por %p51, %p52
      %p54 = scmp.ne.s32.totalorder %s43, %s44
      %p55 = scmp.eq.s32.totalorder %s21, 0
      %p56 = por %p54, %p55
      %p57 = scmp.ne.s32.totalorder %s43, %s44
      %p58 = scmp.eq.s32.totalorder %s22, 3
      %p59 = por %p57, %p58
      %p61 = scmp.ne.s32.totalorder %s44, %s60
      %p62 = scmp.eq.s32.totalorder %s22, 0
      %p63 = por %p61, %p62
      %s65 = sadd.s32 %s64, 1
      %p68 = scmp.eq.s32.totalorder %s16, 3
      %p69 = scmp.ne.s32.totalorder %s64, %s66
      %p70 = scmp.eq.s32.totalorder %s16, 0
      %p71 = por %p69, %p70
      %p72 = scmp.ne.s32.totalorder %s64, %s66
      %p73 = scmp.eq.s32.totalorder %s21, 3
      %p74 = por %p72, %p73
      %p75 = scmp.ne.s32.totalorder %s66, %s67
      %p76 = scmp.eq.s32.totalorder %s21, 0
      %p77 = por %p75, %p76
      %p78 = scmp.ne.s32.totalorder %s66, %s67
      %p79 = scmp.eq.s32.totalorder %s22, 3
      %p80 = por %p78, %p79
      %p82 = scmp.ne.s32.totalorder %s67, %s81
      %p83 = scmp.eq.s32.totalorder %s22, 0
      %p84 = por %p82, %p83
      %s86 = sadd.s32 %s85, 1
      %p89 = scmp.eq.s32.totalorder %s16, 3
      %p90 = scmp.ne.s32.totalorder %s85, %s87
      %p91 = scmp.eq.s32.totalorder %s16, 0
      %p92 = por %p90, %p91
      %p93 = scmp.ne.s32.totalorder %s85, %s87
      %p94 = scmp.eq.s32.totalorder %s21, 3
      %p95 = por %p93, %p94
      %p96 = scmp.ne.s32.totalorder %s87, %s88
      %p97 = scmp.eq.s32.totalorder %s21, 0
      %p98 = por %p96, %p97
      %p99 = scmp.ne.s32.totalorder %s87, %s88
      %p100 = scmp.eq.s32.totalorder %s22, 3
      %p101 = por %p99, %p100
      %p103 = scmp.ne.s32.totalorder %s88, %s102
      %p104 = scmp.eq.s32.totalorder %s22, 0
      %p105 = por %p103, %p104
      %s106 = ssub.s32 %s23, %s35
      %s107 = ssub.s32 %s24, %s31
      %s108 = sor.u32 %s106, %s107
      %p109 = scmp.eq.s32.totalorder %s108, 0
      %s111 = sadd.s32 %s110, 1
      %s112 = scalar_select %p109, %s110, %s111
      %p115 = pneg %p109
      %p116 = scmp.eq.s32.totalorder %s16, 3
      %p117 = por %p115, %p116
      %p118 = scmp.ne.s32.totalorder %s110, %s113
      %p119 = scmp.eq.s32.totalorder %s16, 0
      %p120 = por %p118, %p119
      %p121 = scmp.ne.s32.totalorder %s110, %s113
      %p122 = scmp.eq.s32.totalorder %s21, 3
      %p123 = por %p121, %p122
      %p124 = scmp.ne.s32.totalorder %s113, %s114
      %p125 = scmp.eq.s32.totalorder %s21, 0
      %p126 = por %p124, %p125
      %p127 = scmp.ne.s32.totalorder %s113, %s114
      %p128 = scmp.eq.s32.totalorder %s22, 3
      %p129 = por %p127, %p128
      %p131 = scmp.ne.s32.totalorder %s114, %s130
      %p132 = scmp.eq.s32.totalorder %s22, 0
      %p133 = por %p131, %p132
      %p134 = scmp.le.s32.totalorder 1, %s16
      %p135 = scmp.lt.s32.totalorder %s16, 5
      %p136 = pnand %p134, %p135
      %p137 = pneg %p136
      // Predicated region
      $region9: #{tpu_custom_call.1} parent=5 // pred_check
        _
      $region10: #{tpu_custom_call.1} parent=5 // pred_check_branch
        %139 = sbr.rel (%p136) target = $region12
      $region11: #{tpu_custom_call.1} parent=5 // pred_region
        %s140 = ssub.s32 %s16, 1
        // Predicated region
        $region13: #{tpu_custom_call.1} parent=11 // pred_check
          %p141 = pneg %p77
        $region14: #{tpu_custom_call.1} parent=11 // pred_check_branch
          %143 = sbr.rel (%p141) target = $region16
        $region15: #{tpu_custom_call.1} parent=11 // pred_region
          %145 = vsyncadd [#allocation6], 0
          %s146 = sshll.u32 %s1, 4
          %s147 = int_to_ptr.hbm [resolvable:$true] %s146
          %s148 = sshll.u32 [#allocation5], 4
          %s149 = int_to_ptr.vmem [resolvable:$true] %s148
          %154 = dma.hbm_to_vmem [thread:$0]  %s147, 512, %s149, [#allocation6], 128, 128, 8
        $region16: #{tpu_custom_call.1} parent=11 // pred_fallthru
          _
        // Predicated region
        $region17: #{tpu_custom_call.1} parent=11 // pred_check
          %p155 = pneg %p98
        $region18: #{tpu_custom_call.1} parent=11 // pred_check_branch
          %157 = sbr.rel (%p155) target = $region20
        $region19: #{tpu_custom_call.1} parent=11 // pred_region
          _
        $region20: #{tpu_custom_call.1} parent=11 // pred_fallthru
          _
      $region12: #{tpu_custom_call.1} parent=5 // pred_fallthru
        _
      %p158 = scmp.lt.s32.totalorder %s16, 4
      // Predicated region
      $region21: #{tpu_custom_call.1} parent=5 // pred_check
        %p159 = pneg %p158
      $region22: #{tpu_custom_call.1} parent=5 // pred_check_branch
        %161 = sbr.rel (%p159) target = $region24
      $region23: #{tpu_custom_call.1} parent=5 // pred_region
        // Predicated region
        $region25: #{tpu_custom_call.1} parent=23 // pred_check
          %p162 = pneg %p50
        $region26: #{tpu_custom_call.1} parent=23 // pred_check_branch
          %164 = sbr.rel (%p162) target = $region28
        $region27: #{tpu_custom_call.1} parent=23 // pred_region
          %s165 = sand.u32 %s40, 1
          %s166 = scalar_lea.sflag [#allocation3], %s165
          %s167 = sand.u32 %s40, 1
          %s168 = smul.addr %s167, 8
          %s169 = scalar_lea.vmem [#allocation2], %s168
          %171 = vsyncadd %s166, 0
          %s172 = smul.addr %s23, 2
          %s173 = sadd.s32 %s24, %s172
          %s174 = smul.addr %s173, 8
          %s175 = scalar_lea.hbm %s0, %s174
          %s177 = sshll.u32 %s175, 4
          %s178 = int_to_ptr.hbm [resolvable:$true] %s177
          %s179 = sshll.u32 %s169, 4
          %s180 = int_to_ptr.vmem [resolvable:$true] %s179
          %182 = dma.hbm_to_vmem [thread:$0]  %s178, 128, %s180, %s166
        $region28: #{tpu_custom_call.1} parent=23 // pred_fallthru
          _
      $region24: #{tpu_custom_call.1} parent=5 // pred_fallthru
        _
      %p183 = scmp.le.s32.totalorder 1, %s16
      %p184 = scmp.lt.s32.totalorder %s16, 5
      %p185 = pnand %p183, %p184
      %p186 = pneg %p185
      // Predicated region
      $region29: #{tpu_custom_call.1} parent=5 // pred_check
        _
      $region30: #{tpu_custom_call.1} parent=5 // pred_check_branch
        %188 = sbr.rel (%p185) target = $region32
      $region31: #{tpu_custom_call.1} parent=5 // pred_region
        %s189 = ssub.s32 %s16, 1
        %s190 = sand.u32 %s43, 1
        %s191 = scalar_lea.sflag [#allocation3], %s190
        %s192 = sand.u32 %s43, 1
        %s193 = smul.addr %s192, 8
        %s194 = scalar_lea.vmem [#allocation2], %s193
        // Predicated region
        $region33: #{tpu_custom_call.1} parent=31 // pred_check
          %p195 = pneg %p56
        $region34: #{tpu_custom_call.1} parent=31 // pred_check_branch
          %197 = sbr.rel (%p195) target = $region36
        $region35: #{tpu_custom_call.1} parent=31 // pred_region
          %199 = dma.done %s191, 128
        $region36: #{tpu_custom_call.1} parent=31 // pred_fallthru
          _
        // Predicated region
        $region37: #{tpu_custom_call.1} parent=31 // pred_check
          %p200 = pneg %p77
        $region38: #{tpu_custom_call.1} parent=31 // pred_check_branch
          %202 = sbr.rel (%p200) target = $region40
        $region39: #{tpu_custom_call.1} parent=31 // pred_region
          %204 = dma.done [#allocation6], 512
        $region40: #{tpu_custom_call.1} parent=31 // pred_fallthru
          _
        %s205 = sand.u32 %s43, 1
        %s206 = scalar_lea.sflag [#allocation3], %s205
        %s207 = sand.u32 %s43, 1
        %s208 = smul.addr %s207, 8
        %s209 = scalar_lea.vmem [#allocation2], %s208
        %p210 = pneg %p56
        %p211 = pneg %p53
        %p212 = pneg %p77
        %p213 = pneg %p74
        %p214 = pneg %p98
        %p215 = pneg %p95
        %p216 = pneg %p126
        %p217 = pneg %p123
        %s218 = sand.u32 %s113, 1
        %s219 = scalar_lea.sflag [#allocation4], %s218
        %s220 = sand.u32 %s113, 1
        %s221 = smul.addr %s220, 8
        %s222 = scalar_lea.vmem [#allocation7], %s221
        %v223 = vld [vmem:[%s194] sm:$0xff]
        %v224 = vld [vmem:[#allocation5] sm:$0xff]
        %v225 = vld [vmem:[#allocation5 + $0x8] sm:$0xff]
        %v226 = vld [vmem:[#allocation5 + $0x10] sm:$0xff]
        %v227 = vld [vmem:[#allocation5 + $0x18] sm:$0xff]
        %v228 = vld [vmem:[%s2] sm:$0x1]
        %v230 = vperm.slane %v228, 0
        %vm232 = vcmask 261120
        %v234 = vsel %vm232, %v223, 0
        %236 = vmatpush.msra.mxu0 0.0
        %237 = vmatpush.msra.mxu0 0.0
        %238 = vmatpush.msra.mxu0 0.0
        %239 = vmatpush.msra.mxu0 0.0
        %240 = vmatpush.msra.mxu0 0.0
        %241 = vmatpush.msra.mxu0 0.0
        %242 = vmatpush.msra.mxu0 0.0
        %243 = vmatpush.msra.mxu0 0.0
        %244 = vmatpush.msra.mxu0 0.0
        %245 = vmatpush.msra.mxu0 0.0
        %246 = vmatpush.msra.mxu0 0.0
        %247 = vmatpush.msra.mxu0 0.0
        %248 = vmatpush.msra.mxu0 %v227
        %249 = vmatpush.msra.mxu0 %v226
        %250 = vmatpush.msra.mxu0 %v225
        %251 = vmatpush.msra.mxu0 %v224
        %252 = vmatmul.f32.gmra.mxu0 %v234
        %v253 = vpop.f32.mrf.mxu0
        %v254 = vadd.f32 %v230, %v253
        %255 = vdwg.mxu0
        %vm256 = vcmask 785408
        %257 = vst.msk [vmem:[%s222] sm:$0xff] %vm256, %v254
        %s258 = sand.u32 %s113, 1
        %s259 = scalar_lea.sflag [#allocation4], %s258
        %s260 = sand.u32 %s113, 1
        %s261 = smul.addr %s260, 8
        %s262 = scalar_lea.vmem [#allocation7], %s261
        // Predicated region
        $region41: #{tpu_custom_call.1} parent=31 // pred_check
          %p263 = pneg %p123
        $region42: #{tpu_custom_call.1} parent=31 // pred_check_branch
          %265 = sbr.rel (%p263) target = $region44
        $region43: #{tpu_custom_call.1} parent=31 // pred_region
          %267 = vsyncadd %s259, 0
          %s268 = smul.addr %s25, 2
          %s269 = sadd.s32 %s26, %s268
          %s270 = smul.addr %s269, 8
          %s271 = scalar_lea.hbm %s3, %s270
          %s273 = sshll.u32 %s262, 4
          %s274 = int_to_ptr.vmem [resolvable:$true] %s273
          %s275 = sshll.u32 %s271, 4
          %s276 = int_to_ptr.hbm [resolvable:$true] %s275
          %278 = dma.vmem_to_hbm [thread:$0]  %s274, 128, %s276, %s259
        $region44: #{tpu_custom_call.1} parent=31 // pred_fallthru
          _
      $region32: #{tpu_custom_call.1} parent=5 // pred_fallthru
        _
      %p279 = scmp.le.s32.totalorder 2, %s16
      // Predicated region
      $region45: #{tpu_custom_call.1} parent=5 // pred_check
        %p280 = pneg %p279
      $region46: #{tpu_custom_call.1} parent=5 // pred_check_branch
        %282 = sbr.rel (%p280) target = $region48
      $region47: #{tpu_custom_call.1} parent=5 // pred_region
        %s283 = ssub.s32 %s16, 2
        // Predicated region
        $region49: #{tpu_custom_call.1} parent=47 // pred_check
          %p284 = pneg %p129
        $region50: #{tpu_custom_call.1} parent=47 // pred_check_branch
          %286 = sbr.rel (%p284) target = $region52
        $region51: #{tpu_custom_call.1} parent=47 // pred_region
          %s287 = sand.u32 %s114, 1
          %s288 = scalar_lea.sflag [#allocation4], %s287
          %s289 = sand.u32 %s114, 1
          %s290 = smul.addr %s289, 8
          %s291 = scalar_lea.vmem [#allocation7], %s290
          %293 = dma.done %s288, 128
        $region52: #{tpu_custom_call.1} parent=47 // pred_fallthru
          _
      $region48: #{tpu_custom_call.1} parent=5 // pred_fallthru
        _
    $region6: #{tpu_custom_call.1} parent=1 // loop_footer
      %s20 = sadd.s32 1, %s16
    $region7: #{tpu_custom_call.1} parent=1 // loop_footer_branch
      %15 = sbr.rel target = $region3
    $region8: #{tpu_custom_call.1} parent=1 // loop_exit
      _
    %294 = vsyncpa [#allocation3], 1
    %s295 = scalar_lea.sflag [#allocation3], 1
    %296 = vsyncpa %s295, 1
    %297 = vsyncpa [#allocation6], 1
    %298 = vsyncpa [#allocation4], 1
    %s299 = scalar_lea.sflag [#allocation4], 1
    %300 = vsyncpa %s299, 1

</llo_original>
